<compile_context>
chip_gen: v7x
topology: tpu7x:2x2x1
jax: 0.10.0
libtpu: 0.0.40
codegen_flags: <defaults>
</compile_context>

<pallas_src>
import jax
import jax.numpy as jnp
from jax.experimental import pallas as pl
from jax.experimental.pallas import tpu as pltpu


_MAX_COLS = 512                 # max lane width (multiple of 128)
_TARGET_TILE_BYTES = 2 << 20    # ~2 MiB blocks: near-roofline, VMEM-safe everywhere
_ROW_SPLIT_MIN = 256            # above this many rows, emit >= 2 parallel tiles (v7x)
_VMEM_LIMIT_BYTES = 32 << 20    # explicit scoped-VMEM limit, valid on v5e/v6e/v7x


def _scale_kernel(p_ref, x_ref, o_ref):
    # p_ref: (1,) float32 parameter in SMEM; x_ref/o_ref: lane-dense VMEM tiles.
    p = p_ref[0].astype(x_ref.dtype)     # one SMEM read + cast, hoisted
    o_ref[...] = p * x_ref[...]          # one VPU multiply per vreg, unmasked vst


def _cdiv(a, b):
    return -(-a // b)


def _round_up(a, b):
    return _cdiv(a, b) * b


def oscilator_forward(x, myparam):
    """out = myparam * x  (myparam is a shape-(1,) scalar parameter)."""
    orig_shape = x.shape
    dtype = x.dtype
    total = x.size
    itemsize = jnp.dtype(dtype).itemsize

    # Keep the parameter as float32 in SMEM; cast inside the kernel.
    # TODO(synk): integer/low-precision x would promote in PyTorch; here the
    # multiply stays in x.dtype (exact for the float32 module spec).
    p = myparam.reshape(-1).astype(jnp.float32)

    flat = x.reshape(-1)

    # Lane-dense layout: pick cols in {128, 256, 512} that divides total, so no
    # padding and no output slice are needed (the common NN-tensor case).
    if total % 128 == 0:
        cols = 128
        while cols * 2 <= _MAX_COLS and total % (cols * 2) == 0:
            cols *= 2
        padded_total = total
    else:
        # Rare ragged fallback: minimal pad to a multiple of 128 (one extra copy).
        cols = 128
        padded_total = _round_up(total, cols)
        flat = jnp.pad(flat, (0, padded_total - total))

    rows = padded_total // cols
    x2d = flat.reshape(rows, cols)

    # dtype-aware sublane alignment (f32: 8, bf16: 16, int8/fp8: 32).
    subl = max(8, 32 // itemsize)

    # Tile selection: ~2 MiB blocks, and at least 2 tiles on mid/large inputs so
    # the "parallel" grid axis lets v7x's 2 TensorCores split the stream.
    want_tiles = max(1, _cdiv(rows * cols * itemsize, _TARGET_TILE_BYTES))
    if rows > _ROW_SPLIT_MIN:
        want_tiles = max(want_tiles, 2)
    tile_rows = _round_up(_cdiv(rows, want_tiles), subl)
    grid_len = _cdiv(rows, tile_rows)
    if grid_len <= 1:
        tile_rows = rows          # full-extent block (allowed even if unaligned)
        grid_len = 1
    # Ragged last block (rows % tile_rows != 0) is masked by Pallas — correct
    # for this purely elementwise op, no wrapper padding needed.

    out2d = pl.pallas_call(
        _scale_kernel,
        out_shape=jax.ShapeDtypeStruct((rows, cols), dtype),
        grid=(grid_len,),
        in_specs=[
            pl.BlockSpec(memory_space=pltpu.SMEM),               # scalar param
            pl.BlockSpec((tile_rows, cols), lambda i: (i, 0)),   # x tile
        ],
        out_specs=pl.BlockSpec((tile_rows, cols), lambda i: (i, 0)),
        compiler_params=pltpu.CompilerParams(
            dimension_semantics=("parallel",),
            vmem_limit_bytes=_VMEM_LIMIT_BYTES),
        cost_estimate=pl.CostEstimate(
            flops=total,
            transcendentals=0,
            bytes_accessed=2 * total * itemsize),
    )(p, x2d)

    out_flat = out2d.reshape(-1)
    if padded_total != total:
        out_flat = out_flat[:total]
    return out_flat.reshape(orig_shape)


if __name__ == "__main__":
    key = jax.random.PRNGKey(0)
    x = jax.random.normal(key, (2, 4, 16, 16), dtype=jnp.float32)

    # Matches torch.nn.Parameter(torch.zeros(1)).
    myparam = jnp.zeros((1,), dtype=jnp.float32)

    out = jax.block_until_ready(oscilator_forward(x, myparam))
    assert out.shape == x.shape and out.dtype == x.dtype
    assert jnp.allclose(out, myparam[0] * x)

    # Non-zero parameter sanity check.
    myparam2 = jnp.array([1.5], dtype=jnp.float32)
    out2 = jax.block_until_ready(oscilator_forward(x, myparam2))
    assert jnp.allclose(out2, 1.5 * x)

    # Exercise the multi-tile parallel-grid path (no padding: 8*8*128*128 % 512 == 0).
    xbig = jax.random.normal(jax.random.PRNGKey(1), (8, 8, 128, 128),
                             dtype=jnp.float32)
    outbig = jax.block_until_ready(oscilator_forward(xbig, myparam2))
    assert jnp.allclose(outbig, 1.5 * xbig)

    print("KERNEL_OK")
</pallas_src>

<mosaic_0001>
module attributes {stable_mosaic.version = 11 : i64} {
  func.func @_scale_kernel(%arg0: i32, %arg1: memref<1xf32, #tpu.memory_space<smem>>, %arg2: memref<4x512xf32, #tpu.memory_space<vmem>>, %arg3: memref<4x512xf32, #tpu.memory_space<vmem>>) attributes {dimension_semantics = [#tpu.dimension_semantics<parallel>], iteration_bounds = array<i64: 1>, scalar_prefetch = 0 : i64, scratch_operands = 0 : i64, tpu.core_type = #tpu.core_type<tc>, window_params = [{transform_indices = @transform_0, window_bounds = array<i64: 1>}, {transform_indices = @transform_1, window_bounds = array<i64: 4, 512>}, {transform_indices = @transform_2, window_bounds = array<i64: 4, 512>}]} {
    %c0 = arith.constant 0 : index
    %0 = memref.load %arg1[%c0] : memref<1xf32, #tpu.memory_space<smem>>
    %c0_0 = arith.constant 0 : index
    %c0_1 = arith.constant 0 : index
    %1 = vector.load %arg2[%c0_0, %c0_1] : memref<4x512xf32, #tpu.memory_space<vmem>>, vector<4x512xf32>
    %2 = vector.broadcast %0 : f32 to vector<4x512xf32>
    %3 = arith.mulf %2, %1 : vector<4x512xf32>
    %c0_2 = arith.constant 0 : index
    %c0_3 = arith.constant 0 : index
    %4 = vector.load %arg3[%c0_2, %c0_3] : memref<4x512xf32, #tpu.memory_space<vmem>>, vector<4x512xf32>
    tpu.vector_store %arg3[%c0_2, %c0_3], %3 {strides = array<i32>} : memref<4x512xf32, #tpu.memory_space<vmem>>, vector<4x512xf32>,
    return
  }
  func.func @transform_0(%arg0: i32) -> i32 {
    %c0_i32 = arith.constant 0 : i32
    %c0_i32_0 = arith.constant 0 : i32
    return %c0_i32 : i32
  }
  func.func @transform_1(%arg0: i32) -> (i32, i32) {
    %c0_i32 = arith.constant 0 : i32
    %c0_i32_0 = arith.constant 0 : i32
    return %arg0, %c0_i32 : i32, i32
  }
  func.func @transform_2(%arg0: i32) -> (i32, i32) {
    %c0_i32 = arith.constant 0 : i32
    %c0_i32_0 = arith.constant 0 : i32
    return %arg0, %c0_i32 : i32, i32
  }
}

</mosaic_0001>

<llo_original>
// kernel: tpu_custom_call.1
$region0: #{tpu_custom_call.1}
  #allocation0 [shape = 'u32[]', space=smem, size = 0x4, offset = 0x4, fixed_abs, tag = 'smem constant byte address 0x4 - core index']
  #allocation1 [shape = 'u32[144,128]{1,0:T(1,128)}', space=vmem, size = 0x12000, scoped, tag = 'internal scratch']
  #allocation2 [shape = 'f32[1]{0:T(128)S(6)}', space=smem, size = 0x200, scoped, tag = 'scoped memory for tpu_custom_call.1']
  %s0 = inlined_call_operand.<no memory space> [shape: f32[1], index: 0, kind: input, shape index: {}]
  %s1 = inlined_call_operand.hbm [shape: f32[4,512], index: 1, kind: input, shape index: {}]
  %s2 = inlined_call_operand.hbm [shape: f32[4,512], index: 2, kind: output, shape index: {}]
  %s3 = sld [smem:[#allocation0]]
  $region22: #{tpu_custom_call.1} parent=0
    _
  %s5 = ssub.s32 1, %s3
  %s6 = scalar_select 0, %s5, %s3
  %7 = sst [smem:[#allocation2]] %s0
  $region1: #{tpu_custom_call.1} parent=0
    #allocation3 [shape = 'u8[8192]{0}', space=vmem, size = 0x2000, scoped, tag = 'input window, operand 1, single buffered']
    #allocation4 [shape = 's32[1]{0}', space=sflag, size = 0x4, scoped, tag = 'scoped memory for tpu_custom_call.1']
    #allocation5 [shape = 's32[1]{0}', space=sflag, size = 0x4, scoped, tag = 'scoped memory for tpu_custom_call.1']
    #allocation6 [shape = 'u8[8192]{0}', space=vmem, size = 0x2000, scoped, tag = 'output window, operand 0, single buffered']
    %8 = vsyncpa [#allocation4], 0
    %9 = vsyncpa [#allocation5], 0
    // Predicated region
    $region2: #{tpu_custom_call.1} parent=1 // pred_check
      _
    $region3: #{tpu_custom_call.1} parent=1 // pred_check_branch
      %11 = sbr.rel (0) target = $region5
    $region4: #{tpu_custom_call.1} parent=1 // pred_region
      _
    $region5: #{tpu_custom_call.1} parent=1 // pred_fallthru
      _
    // Predicated region
    $region6: #{tpu_custom_call.1} parent=1 // pred_check
      _
    $region7: #{tpu_custom_call.1} parent=1 // pred_check_branch
      %13 = sbr.rel (0) target = $region9
    $region8: #{tpu_custom_call.1} parent=1 // pred_region
      %s15 = ssub.s32 256, 256
      %16 = vsyncadd [#allocation4], %s15
      %s18 = sshll.u32 [#allocation3], 4
      %s19 = int_to_ptr.vmem [resolvable:$true] %s18
      %21 = dma.hbm_to_vmem [thread:$0]  %s1, 256, %s19, [#allocation4]
    $region9: #{tpu_custom_call.1} parent=1 // pred_fallthru
      _
    // Predicated region
    $region10: #{tpu_custom_call.1} parent=1 // pred_check
      _
    $region11: #{tpu_custom_call.1} parent=1 // pred_check_branch
      %23 = sbr.rel (0) target = $region13
    $region12: #{tpu_custom_call.1} parent=1 // pred_region
      %24 = dma.done [#allocation4], 256
    $region13: #{tpu_custom_call.1} parent=1 // pred_fallthru
      _
    %s25 = sld [smem:[#allocation2]]
    %v26 = vld [vmem:[#allocation3] sm:$0xff]
    %v27 = vld [vmem:[#allocation3 + $0x8] sm:$0xff]
    %v28 = vstv %s25
    %v29 = vmul.f32 %v28, %v26
    %v30 = vmul.f32 %v28, %v27
    %31 = vst [vmem:[#allocation6] sm:$0xff] %v29
    %32 = vst [vmem:[#allocation6 + $0x8] sm:$0xff] %v30
    // Predicated region
    $region14: #{tpu_custom_call.1} parent=1 // pred_check
      _
    $region15: #{tpu_custom_call.1} parent=1 // pred_check_branch
      %34 = sbr.rel (0) target = $region17
    $region16: #{tpu_custom_call.1} parent=1 // pred_region
      %s36 = ssub.s32 256, 256
      %37 = vsyncadd [#allocation5], %s36
      %s39 = sshll.u32 [#allocation6], 4
      %s40 = int_to_ptr.vmem [resolvable:$true] %s39
      %42 = dma.vmem_to_hbm [thread:$0]  %s40, 256, %s2, [#allocation5]
    $region17: #{tpu_custom_call.1} parent=1 // pred_fallthru
      _
    // Predicated region
    $region18: #{tpu_custom_call.1} parent=1 // pred_check
      _
    $region19: #{tpu_custom_call.1} parent=1 // pred_check_branch
      %44 = sbr.rel (0) target = $region21
    $region20: #{tpu_custom_call.1} parent=1 // pred_region
      %45 = dma.done [#allocation5], 256
    $region21: #{tpu_custom_call.1} parent=1 // pred_fallthru
      _
    %46 = vsyncpa [#allocation4], 1
    %47 = vsyncpa [#allocation5], 1

</llo_original>
